<compile_context>
chip_gen: v6e
topology: v6e:2x2x1
jax: 0.10.0
libtpu: 0.0.40
codegen_flags: <defaults>
</compile_context>

<pallas_src>
import functools

import jax
import jax.numpy as jnp
from jax.experimental import pallas as pl
from jax.experimental.pallas import tpu as pltpu

_LANE = 128


def _round_up(n: int, m: int) -> int:
    return ((n + m - 1) // m) * m


def _pad2d(a, rows, cols, dtype):
    out = jnp.zeros((rows, cols), dtype)
    return out.at[: a.shape[0], : a.shape[1]].set(a.astype(dtype))


# ----------------------------- Fused Pallas kernel ---------------------------

def _gcn_fused_kernel(*refs, num_layers: int, nclass: int):
    """All GCN layers + final log_softmax in one kernel.

    refs = (adj, x, w0, b0, w1, b1, ..., w_{L-1}, b_{L-1}, out)
    adj / x / w_i are bf16 (MXU inputs); biases and the epilogue are f32.
    """
    adj_ref, x_ref = refs[0], refs[1]
    out_ref = refs[-1]
    wb = refs[2:-1]

    adj = adj_ref[...]                       # (Np, Np) bf16 — loaded once
    h = x_ref[...]                           # (Np, F0p) bf16

    for i in range(num_layers):
        w = wb[2 * i][...]                   # (Fin_p, Fout_p) bf16
        b = wb[2 * i + 1][...]               # (1, Fout_p)    f32
        # H = x @ W first (small matrix), f32 MXU accumulation.
        xw = jnp.dot(h, w, preferred_element_type=jnp.float32)
        # Then the N^2-cost matmul adj @ H at F_out width.
        y = jnp.dot(adj, xw.astype(jnp.bfloat16),
                    preferred_element_type=jnp.float32) + b
        if i < num_layers - 1:
            y = jnp.maximum(y, 0.0)          # fused ReLU (f32, VPU)
            h = y.astype(jnp.bfloat16)       # bf16 input for the next layer
            # dropout(training=False) -> identity
        else:
            # Masked, max-stabilized log_softmax over the valid class lanes.
            lane = jax.lax.broadcasted_iota(jnp.int32, y.shape, 1)
            valid = lane < nclass
            ym = jnp.where(valid, y, -jnp.inf)
            m = jnp.max(ym, axis=-1, keepdims=True)
            s = ym - m                                      # -inf on pad lanes
            lse = jnp.log(jnp.sum(jnp.exp(s), axis=-1, keepdims=True))
            # Padded class lanes store 0.0 (finite), not -inf.
            res = jnp.where(valid, s - lse, 0.0)
            out_ref[...] = res.astype(out_ref.dtype)        # bf16 writeback


# ------------------------------- Wrappers ------------------------------------

def gcn_normalize(adj):
    """GCN normalization D^{-1/2}(A+I)D^{-1/2}, emitted directly in bf16.

    Self-loops are added via a diagonal update (no jnp.eye materialization).
    """
    n = adj.shape[0]
    idx = jnp.arange(n)
    a_hat = adj.astype(jnp.float32).at[idx, idx].add(1.0)
    deg = jnp.sum(a_hat, axis=1)
    d_inv_sqrt = jnp.where(deg > 0, jax.lax.rsqrt(deg), 0.0)
    return (a_hat * d_inv_sqrt[:, None] * d_inv_sqrt[None, :]).astype(jnp.bfloat16)


def init_gcn_params(key, nfeat, nhid, nclass, num_layers):
    """Deterministic Glorot-style init mirroring GCNConv parameter shapes."""
    dims = [nfeat] + [nhid] * (num_layers - 1) + [nclass]
    params = []
    for i in range(num_layers):
        key, wk = jax.random.split(key)
        fan_in, fan_out = dims[i], dims[i + 1]
        scale = jnp.sqrt(6.0 / (fan_in + fan_out))
        w = jax.random.uniform(wk, (fan_in, fan_out), jnp.float32, -scale, scale)
        b = jnp.zeros((fan_out,), jnp.float32)
        params.append((w, b))
    return params


def gcn_prepare(x, adj, params):
    """ONE-TIME preprocessing (cache the result): normalize adj, cast to bf16,
    zero-pad all axes to 128-lane multiples. Hoisted out of the per-call path."""
    n, nfeat = x.shape
    dims = [nfeat] + [w.shape[1] for (w, _) in params]
    n_pad = _round_up(n, _LANE)
    dpad = [_round_up(d, _LANE) for d in dims]

    adj_p = _pad2d(gcn_normalize(adj), n_pad, n_pad, jnp.bfloat16)
    x_p = _pad2d(x, n_pad, dpad[0], jnp.bfloat16)

    flat = []
    for i, (w, b) in enumerate(params):
        flat.append(_pad2d(w, dpad[i], dpad[i + 1], jnp.bfloat16))
        flat.append(_pad2d(b.reshape(1, -1), 1, dpad[i + 1], jnp.float32))

    inputs = tuple(jax.device_put(a) for a in ([adj_p, x_p] + flat))
    meta = (n, n_pad, tuple(dpad))
    return inputs, meta


def build_gcn_forward(inputs, meta, num_layers, nclass):
    """Builds the jitted fused forward over the cached padded inputs."""
    n, n_pad, dpad = meta
    c_pad = dpad[-1]

    kernel = functools.partial(
        _gcn_fused_kernel, num_layers=num_layers, nclass=nclass)

    in_specs = [pl.BlockSpec(a.shape, lambda: (0, 0)) for a in inputs]

    # Advisory cost for XLA's scheduler.
    flops = 0
    for i in range(num_layers):
        flops += 2 * n_pad * dpad[i] * dpad[i + 1]   # x @ W
        flops += 2 * n_pad * n_pad * dpad[i + 1]     # adj @ (xW)
    in_bytes = sum(int(a.size) * a.dtype.itemsize for a in inputs)
    out_bytes = n_pad * c_pad * 2                    # bf16 output
    cost = pl.CostEstimate(flops=int(flops),
                           transcendentals=int(n_pad * c_pad),
                           bytes_accessed=int(in_bytes + out_bytes))

    # Scoped-VMEM budget: resident inputs/outputs (double-buffered) plus
    # intermediate activation headroom, clamped to the smallest physical VMEM
    # across generations (64 MiB on v7x) so one plan works everywhere.
    inter_bytes = n_pad * max(dpad) * 6              # f32 acc + bf16 H
    vmem_limit = int(min(64 << 20,
                         max(8 << 20,
                             2 * (in_bytes + out_bytes) + inter_bytes + (2 << 20))))

    fused = pl.pallas_call(
        kernel,
        out_shape=jax.ShapeDtypeStruct((n_pad, c_pad), jnp.bfloat16),
        in_specs=in_specs,
        out_specs=pl.BlockSpec((n_pad, c_pad), lambda: (0, 0)),
        compiler_params=pltpu.CompilerParams(vmem_limit_bytes=vmem_limit),
        cost_estimate=cost,
    )

    @jax.jit
    def forward(*inp):
        out = fused(*inp)
        return out[:n, :nclass]

    return forward


# --------------------------------- Main ---------------------------------------

if __name__ == "__main__":
    # Small synthetic graph.
    N = 16
    NFEAT = 32
    NHID = 32
    NCLASS = 8
    NUM_LAYERS = 3
    DROPOUT = 0.5   # unused at inference (F.dropout identity when training=False)

    key = jax.random.PRNGKey(0)
    kx, kadj, kparam = jax.random.split(key, 3)

    x = jax.random.normal(kx, (N, NFEAT), jnp.float32)
    # Random symmetric {0,1} adjacency without self-loops.
    a = (jax.random.uniform(kadj, (N, N)) < 0.3).astype(jnp.float32)
    adj = jnp.clip(a + a.T, 0.0, 1.0) * (1.0 - jnp.eye(N, dtype=jnp.float32))

    params = init_gcn_params(kparam, NFEAT, NHID, NCLASS, NUM_LAYERS)

    # One-time prep (normalization + padding), then a jitted fused forward.
    inputs, meta = gcn_prepare(x, adj, params)
    inputs = jax.block_until_ready(inputs)
    forward = build_gcn_forward(inputs, meta, NUM_LAYERS, NCLASS)

    out = forward(*inputs)                 # compiles + runs
    out = forward(*inputs)                 # cached path: just the fused kernel
    out = jax.block_until_ready(out)

    # Pure-JAX reference mirroring the kernel's bf16 MXU inputs / f32 epilogue.
    def ref_forward(x, adj, params):
        na = gcn_normalize(adj)
        h = x.astype(jnp.bfloat16)
        for i, (w, b) in enumerate(params):
            xw = jnp.dot(h, w.astype(jnp.bfloat16),
                         preferred_element_type=jnp.float32)
            y = jnp.dot(na, xw.astype(jnp.bfloat16),
                        preferred_element_type=jnp.float32) + b[None, :]
            if i < len(params) - 1:
                h = jnp.maximum(y, 0.0).astype(jnp.bfloat16)
            else:
                return jax.nn.log_softmax(y, axis=-1)

    ref = ref_forward(x, adj, params)
    out_f32 = out.astype(jnp.float32)

    assert out.shape == (N, NCLASS)
    assert out.dtype == jnp.bfloat16
    # log-softmax rows should sum (in prob space) to ~1 (bf16 output tolerance).
    assert jnp.allclose(jnp.sum(jnp.exp(out_f32), axis=-1), 1.0, atol=2e-2)
    assert jnp.allclose(out_f32, ref, atol=5e-2, rtol=5e-2), \
        float(jnp.max(jnp.abs(out_f32 - ref)))
    print("KERNEL_OK")
</pallas_src>

<mosaic_0001>
module attributes {stable_mosaic.version = 11 : i64} {
  func.func @_gcn_fused_kernel(%arg0: memref<128x128xbf16, #tpu.memory_space<vmem>>, %arg1: memref<128x128xbf16, #tpu.memory_space<vmem>>, %arg2: memref<128x128xbf16, #tpu.memory_space<vmem>>, %arg3: memref<1x128xf32, #tpu.memory_space<vmem>>, %arg4: memref<128x128xbf16, #tpu.memory_space<vmem>>, %arg5: memref<1x128xf32, #tpu.memory_space<vmem>>, %arg6: memref<128x128xbf16, #tpu.memory_space<vmem>>, %arg7: memref<1x128xf32, #tpu.memory_space<vmem>>, %arg8: memref<128x128xbf16, #tpu.memory_space<vmem>>) attributes {dimension_semantics = [], scalar_prefetch = 0 : i64, scratch_operands = 0 : i64, tpu.core_type = #tpu.core_type<tc>} {
    %c0 = arith.constant 0 : index
    %c0_0 = arith.constant 0 : index
    %0 = vector.load %arg0[%c0, %c0_0] : memref<128x128xbf16, #tpu.memory_space<vmem>>, vector<128x128xbf16>
    %c0_1 = arith.constant 0 : index
    %c0_2 = arith.constant 0 : index
    %1 = vector.load %arg1[%c0_1, %c0_2] : memref<128x128xbf16, #tpu.memory_space<vmem>>, vector<128x128xbf16>
    %c0_3 = arith.constant 0 : index
    %c0_4 = arith.constant 0 : index
    %2 = vector.load %arg2[%c0_3, %c0_4] : memref<128x128xbf16, #tpu.memory_space<vmem>>, vector<128x128xbf16>
    %c0_5 = arith.constant 0 : index
    %c0_6 = arith.constant 0 : index
    %3 = vector.load %arg3[%c0_5, %c0_6] : memref<1x128xf32, #tpu.memory_space<vmem>>, vector<1x128xf32>
    %cst = arith.constant dense<0.000000e+00> : vector<128x128xf32>
    %4 = tpu.matmul %1, %2, %cst {dimension_numbers = #tpu.dot_dimension_numbers<[1], [0], [0], [1], [0, 0, 1, 1], [], []>} : vector<128x128xbf16>, vector<128x128xbf16>, vector<128x128xf32> -> vector<128x128xf32>
    %5 = arith.truncf %4 : vector<128x128xf32> to vector<128x128xbf16>
    %cst_7 = arith.constant dense<0.000000e+00> : vector<128x128xf32>
    %6 = tpu.matmul %0, %5, %cst_7 {dimension_numbers = #tpu.dot_dimension_numbers<[1], [0], [0], [1], [0, 0, 1, 1], [], []>} : vector<128x128xbf16>, vector<128x128xbf16>, vector<128x128xf32> -> vector<128x128xf32>
    %7 = vector.broadcast %3 : vector<1x128xf32> to vector<128x128xf32>
    %8 = arith.addf %6, %7 : vector<128x128xf32>
    %cst_8 = arith.constant 0.000000e+00 : f32
    %9 = vector.broadcast %cst_8 : f32 to vector<128x128xf32>
    %10 = arith.maximumf %8, %9 : vector<128x128xf32>
    %11 = arith.truncf %10 : vector<128x128xf32> to vector<128x128xbf16>
    %c0_9 = arith.constant 0 : index
    %c0_10 = arith.constant 0 : index
    %12 = vector.load %arg4[%c0_9, %c0_10] : memref<128x128xbf16, #tpu.memory_space<vmem>>, vector<128x128xbf16>
    %c0_11 = arith.constant 0 : index
    %c0_12 = arith.constant 0 : index
    %13 = vector.load %arg5[%c0_11, %c0_12] : memref<1x128xf32, #tpu.memory_space<vmem>>, vector<1x128xf32>
    %cst_13 = arith.constant dense<0.000000e+00> : vector<128x128xf32>
    %14 = tpu.matmul %11, %12, %cst_13 {dimension_numbers = #tpu.dot_dimension_numbers<[1], [0], [0], [1], [0, 0, 1, 1], [], []>} : vector<128x128xbf16>, vector<128x128xbf16>, vector<128x128xf32> -> vector<128x128xf32>
    %15 = arith.truncf %14 : vector<128x128xf32> to vector<128x128xbf16>
    %cst_14 = arith.constant dense<0.000000e+00> : vector<128x128xf32>
    %16 = tpu.matmul %0, %15, %cst_14 {dimension_numbers = #tpu.dot_dimension_numbers<[1], [0], [0], [1], [0, 0, 1, 1], [], []>} : vector<128x128xbf16>, vector<128x128xbf16>, vector<128x128xf32> -> vector<128x128xf32>
    %17 = vector.broadcast %13 : vector<1x128xf32> to vector<128x128xf32>
    %18 = arith.addf %16, %17 : vector<128x128xf32>
    %cst_15 = arith.constant 0.000000e+00 : f32
    %19 = vector.broadcast %cst_15 : f32 to vector<128x128xf32>
    %20 = arith.maximumf %18, %19 : vector<128x128xf32>
    %21 = arith.truncf %20 : vector<128x128xf32> to vector<128x128xbf16>
    %c0_16 = arith.constant 0 : index
    %c0_17 = arith.constant 0 : index
    %22 = vector.load %arg6[%c0_16, %c0_17] : memref<128x128xbf16, #tpu.memory_space<vmem>>, vector<128x128xbf16>
    %c0_18 = arith.constant 0 : index
    %c0_19 = arith.constant 0 : index
    %23 = vector.load %arg7[%c0_18, %c0_19] : memref<1x128xf32, #tpu.memory_space<vmem>>, vector<1x128xf32>
    %cst_20 = arith.constant dense<0.000000e+00> : vector<128x128xf32>
    %24 = tpu.matmul %21, %22, %cst_20 {dimension_numbers = #tpu.dot_dimension_numbers<[1], [0], [0], [1], [0, 0, 1, 1], [], []>} : vector<128x128xbf16>, vector<128x128xbf16>, vector<128x128xf32> -> vector<128x128xf32>
    %25 = arith.truncf %24 : vector<128x128xf32> to vector<128x128xbf16>
    %cst_21 = arith.constant dense<0.000000e+00> : vector<128x128xf32>
    %26 = tpu.matmul %0, %25, %cst_21 {dimension_numbers = #tpu.dot_dimension_numbers<[1], [0], [0], [1], [0, 0, 1, 1], [], []>} : vector<128x128xbf16>, vector<128x128xbf16>, vector<128x128xf32> -> vector<128x128xf32>
    %27 = vector.broadcast %23 : vector<1x128xf32> to vector<128x128xf32>
    %28 = arith.addf %26, %27 : vector<128x128xf32>
    %29 = tpu.iota {dimensions = array<i32: 1>} : vector<128x128xi32>
    %c8_i32 = arith.constant 8 : i32
    %30 = vector.broadcast %c8_i32 : i32 to vector<128x128xi32>
    %31 = arith.cmpi slt, %29, %30 : vector<128x128xi32>
    %cst_22 = arith.constant 0xFF800000 : f32
    %32 = vector.broadcast %cst_22 : f32 to vector<128x128xf32>
    %33 = arith.select %31, %28, %32 : vector<128x128xi1>, vector<128x128xf32>
    %cst_23 = arith.constant dense<0xFF800000> : vector<128xf32>
    %34 = vector.multi_reduction <maximumf>, %33, %cst_23 [1] : vector<128x128xf32> to vector<128xf32>
    %35 = vector.shape_cast %34 : vector<128xf32> to vector<128x1xf32>
    %36 = vector.broadcast %35 : vector<128x1xf32> to vector<128x128xf32>
    %37 = arith.subf %33, %36 : vector<128x128xf32>
    %38 = math.exp %37 : vector<128x128xf32>
    %cst_24 = arith.constant dense<0.000000e+00> : vector<128xf32>
    %39 = vector.multi_reduction <add>, %38, %cst_24 [1] : vector<128x128xf32> to vector<128xf32>
    %40 = vector.shape_cast %39 : vector<128xf32> to vector<128x1xf32>
    %41 = math.log %40 : vector<128x1xf32>
    %42 = vector.broadcast %41 : vector<128x1xf32> to vector<128x128xf32>
    %43 = arith.subf %37, %42 : vector<128x128xf32>
    %cst_25 = arith.constant 0.000000e+00 : f32
    %44 = vector.broadcast %cst_25 : f32 to vector<128x128xf32>
    %45 = arith.select %31, %43, %44 : vector<128x128xi1>, vector<128x128xf32>
    %46 = arith.truncf %45 : vector<128x128xf32> to vector<128x128xbf16>
    %c0_26 = arith.constant 0 : index
    %c0_27 = arith.constant 0 : index
    %47 = vector.load %arg8[%c0_26, %c0_27] : memref<128x128xbf16, #tpu.memory_space<vmem>>, vector<128x128xbf16>
    tpu.vector_store %arg8[%c0_26, %c0_27], %46 {strides = array<i32>} : memref<128x128xbf16, #tpu.memory_space<vmem>>, vector<128x128xbf16>,
    return
  }
}

</mosaic_0001>

<llo_original>
// kernel: forward.1
$region0: #{forward.1}
  #allocation0 [shape = 'u32[]', space=smem, size = 0x4, offset = 0x4, fixed_abs, tag = 'smem constant byte address 0x4 - core index']
  #allocation1 [shape = 'u32[144,128]{1,0:T(1,128)}', space=vmem, size = 0x12000, scoped, tag = 'internal scratch']
  %s0 = inlined_call_operand.hbm [shape: bf16[128,128], index: 0, kind: input, shape index: {}]
  %s1 = inlined_call_operand.hbm [shape: bf16[128,128], index: 1, kind: input, shape index: {}]
  %s2 = inlined_call_operand.hbm [shape: bf16[128,128], index: 2, kind: input, shape index: {}]
  %s3 = inlined_call_operand.vmem [shape: f32[1,128], index: 3, kind: input, shape index: {}]
  %s4 = inlined_call_operand.hbm [shape: bf16[128,128], index: 4, kind: input, shape index: {}]
  %s5 = inlined_call_operand.vmem [shape: f32[1,128], index: 5, kind: input, shape index: {}]
  %s6 = inlined_call_operand.hbm [shape: bf16[128,128], index: 6, kind: input, shape index: {}]
  %s7 = inlined_call_operand.vmem [shape: f32[1,128], index: 7, kind: input, shape index: {}]
  %s8 = inlined_call_operand.vmem [shape: bf16[128,128], index: 8, kind: output, shape index: {}]
  %s9 = sld [smem:[#allocation0]]
  $region62: #{forward.1} parent=0
    _
  %s11 = ssub.s32 1, %s9
  %s12 = scalar_select 0, %s11, %s9
  $region1: #{forward.1} parent=0
    #allocation2 [shape = 'u8[32768]{0}', space=vmem, size = 0x8000, scoped, tag = 'input window, operand 0, single buffered']
    #allocation3 [shape = 's32[1]{0}', space=sflag, size = 0x4, scoped, tag = 'scoped memory for forward.1']
    #allocation4 [shape = 'u8[32768]{0}', space=vmem, size = 0x8000, scoped, tag = 'input window, operand 1, single buffered']
    #allocation5 [shape = 's32[1]{0}', space=sflag, size = 0x4, scoped, tag = 'scoped memory for forward.1']
    #allocation6 [shape = 'u8[32768]{0}', space=vmem, size = 0x8000, scoped, tag = 'input window, operand 2, single buffered']
    #allocation7 [shape = 'u8[32768]{0}', space=vmem, size = 0x8000, scoped, tag = 'input window, operand 4, single buffered']
    #allocation8 [shape = 's32[1]{0}', space=sflag, size = 0x4, scoped, tag = 'scoped memory for forward.1']
    #allocation9 [shape = 'u8[32768]{0}', space=vmem, size = 0x8000, scoped, tag = 'input window, operand 6, single buffered']
    %13 = vsyncpa [#allocation3], 0
    %14 = vsyncpa [#allocation5], 0
    %15 = vsyncpa [#allocation8], 0
    // Predicated region
    $region2: #{forward.1} parent=1 // pred_check
      _
    $region3: #{forward.1} parent=1 // pred_check_branch
      %17 = sbr.rel (0) target = $region5
    $region4: #{forward.1} parent=1 // pred_region
      %s19 = ssub.s32 1024, 1024
      %20 = vsyncadd [#allocation3], %s19
      %s21 = sshll.u32 [#allocation2], 4
      %s22 = int_to_ptr.vmem [resolvable:$true] %s21
      %27 = dma.hbm_to_vmem [thread:$0]  %s0, 1024, %s22, [#allocation3], 64, 64, 4
    $region5: #{forward.1} parent=1 // pred_fallthru
      _
    // Predicated region
    $region6: #{forward.1} parent=1 // pred_check
      _
    $region7: #{forward.1} parent=1 // pred_check_branch
      %29 = sbr.rel (0) target = $region9
    $region8: #{forward.1} parent=1 // pred_region
      %s31 = ssub.s32 1024, 1024
      %32 = vsyncadd [#allocation5], %s31
      %s33 = sshll.u32 [#allocation4], 4
      %s34 = int_to_ptr.vmem [resolvable:$true] %s33
      %39 = dma.hbm_to_vmem [thread:$0]  %s1, 1024, %s34, [#allocation5], 64, 64, 4
    $region9: #{forward.1} parent=1 // pred_fallthru
      _
    // Predicated region
    $region10: #{forward.1} parent=1 // pred_check
      _
    $region11: #{forward.1} parent=1 // pred_check_branch
      %41 = sbr.rel (0) target = $region13
    $region12: #{forward.1} parent=1 // pred_region
      %s43 = ssub.s32 1024, 1024
      %44 = vsyncadd [#allocation5], %s43
      %s45 = sshll.u32 [#allocation6], 4
      %s46 = int_to_ptr.vmem [resolvable:$true] %s45
      %51 = dma.hbm_to_vmem [thread:$0]  %s2, 1024, %s46, [#allocation5], 64, 64, 4
    $region13: #{forward.1} parent=1 // pred_fallthru
      _
    // Predicated region
    $region14: #{forward.1} parent=1 // pred_check
      _
    $region15: #{forward.1} parent=1 // pred_check_branch
      %53 = sbr.rel (0) target = $region17
    $region16: #{forward.1} parent=1 // pred_region
      _
    $region17: #{forward.1} parent=1 // pred_fallthru
      _
    // Predicated region
    $region18: #{forward.1} parent=1 // pred_check
      _
    $region19: #{forward.1} parent=1 // pred_check_branch
      %55 = sbr.rel (0) target = $region21
    $region20: #{forward.1} parent=1 // pred_region
      %s57 = ssub.s32 1024, 1024
      %58 = vsyncadd [#allocation8], %s57
      %s59 = sshll.u32 [#allocation7], 4
      %s60 = int_to_ptr.vmem [resolvable:$true] %s59
      %65 = dma.hbm_to_vmem [thread:$0]  %s4, 1024, %s60, [#allocation8], 64, 64, 4
    $region21: #{forward.1} parent=1 // pred_fallthru
      _
    // Predicated region
    $region22: #{forward.1} parent=1 // pred_check
      _
    $region23: #{forward.1} parent=1 // pred_check_branch
      %67 = sbr.rel (0) target = $region25
    $region24: #{forward.1} parent=1 // pred_region
      _
    $region25: #{forward.1} parent=1 // pred_fallthru
      _
    // Predicated region
    $region26: #{forward.1} parent=1 // pred_check
      _
    $region27: #{forward.1} parent=1 // pred_check_branch
      %69 = sbr.rel (0) target = $region29
    $region28: #{forward.1} parent=1 // pred_region
      %s71 = ssub.s32 1024, 1024
      %72 = vsyncadd [#allocation8], %s71
      %s73 = sshll.u32 [#allocation9], 4
      %s74 = int_to_ptr.vmem [resolvable:$true] %s73
      %79 = dma.hbm_to_vmem [thread:$0]  %s6, 1024, %s74, [#allocation8], 64, 64, 4
    $region29: #{forward.1} parent=1 // pred_fallthru
      _
    // Predicated region
    $region30: #{forward.1} parent=1 // pred_check
      _
    $region31: #{forward.1} parent=1 // pred_check_branch
      %81 = sbr.rel (0) target = $region33
    $region32: #{forward.1} parent=1 // pred_region
      _
    $region33: #{forward.1} parent=1 // pred_fallthru
      _
    // Predicated region
    $region34: #{forward.1} parent=1 // pred_check
      _
    $region35: #{forward.1} parent=1 // pred_check_branch
      %83 = sbr.rel (0) target = $region37
    $region36: #{forward.1} parent=1 // pred_region
      %84 = dma.done [#allocation3], 1024
    $region37: #{forward.1} parent=1 // pred_fallthru
      _
    // Predicated region
    $region38: #{forward.1} parent=1 // pred_check
      _
    $region39: #{forward.1} parent=1 // pred_check_branch
      %86 = sbr.rel (0) target = $region41
    $region40: #{forward.1} parent=1 // pred_region
      %87 = dma.done [#allocation5], 1024
    $region41: #{forward.1} parent=1 // pred_fallthru
      _
    // Predicated region
    $region42: #{forward.1} parent=1 // pred_check
      _
    $region43: #{forward.1} parent=1 // pred_check_branch
      %89 = sbr.rel (0) target = $region45
    $region44: #{forward.1} parent=1 // pred_region
      %90 = dma.done [#allocation5], 1024
    $region45: #{forward.1} parent=1 // pred_fallthru
      _
    // Predicated region
    $region46: #{forward.1} parent=1 // pred_check
      _
    $region47: #{forward.1} parent=1 // pred_check_branch
      %92 = sbr.rel (0) target = $region49
    $region48: #{forward.1} parent=1 // pred_region
      %93 = dma.done [#allocation8], 1024
    $region49: #{forward.1} parent=1 // pred_fallthru
      _
    // Predicated region
    $region50: #{forward.1} parent=1 // pred_check
      _
    $region51: #{forward.1} parent=1 // pred_check_branch
      %95 = sbr.rel (0) target = $region53
    $region52: #{forward.1} parent=1 // pred_region
      %96 = dma.done [#allocation8], 1024
    $region53: #{forward.1} parent=1 // pred_fallthru
      _
    %v98 = vld [vmem:[#allocation2] sm:$0xf]
    %v99 = vld [vmem:[#allocation2 + $0x4] sm:$0xf]
    %v100 = vld [vmem:[#allocation2 + $0x8] sm:$0xf]
    %v101 = vld [vmem:[#allocation2 + $0xc] sm:$0xf]
    %v102 = vld [vmem:[#allocation2 + $0x10] sm:$0xf]
    %v103 = vld [vmem:[#allocation2 + $0x14] sm:$0xf]
    %v104 = vld [vmem:[#allocation2 + $0x18] sm:$0xf]
    %v105 = vld [vmem:[#allocation2 + $0x1c] sm:$0xf]
    %v106 = vld [vmem:[#allocation2 + $0x20] sm:$0xf]
    %v107 = vld [vmem:[#allocation2 + $0x24] sm:$0xf]
    %v108 = vld [vmem:[#allocation2 + $0x28] sm:$0xf]
    %v109 = vld [vmem:[#allocation2 + $0x2c] sm:$0xf]
    %v110 = vld [vmem:[#allocation2 + $0x30] sm:$0xf]
    %v111 = vld [vmem:[#allocation2 + $0x34] sm:$0xf]
    %v112 = vld [vmem:[#allocation2 + $0x38] sm:$0xf]
    %v113 = vld [vmem:[#allocation2 + $0x3c] sm:$0xf]
    %v114 = vld [vmem:[#allocation4] sm:$0xf]
    %v115 = vld [vmem:[#allocation4 + $0x4] sm:$0xf]
    %v116 = vld [vmem:[#allocation4 + $0x8] sm:$0xf]
    %v117 = vld [vmem:[#allocation4 + $0xc] sm:$0xf]
    %v118 = vld [vmem:[#allocation4 + $0x10] sm:$0xf]
    %v119 = vld [vmem:[#allocation4 + $0x14] sm:$0xf]
    %v120 = vld [vmem:[#allocation4 + $0x18] sm:$0xf]
    %v121 = vld [vmem:[#allocation4 + $0x1c] sm:$0xf]
    %v122 = vld [vmem:[#allocation4 + $0x20] sm:$0xf]
    %v123 = vld [vmem:[#allocation4 + $0x24] sm:$0xf]
    %v124 = vld [vmem:[#allocation4 + $0x28] sm:$0xf]
    %v125 = vld [vmem:[#allocation4 + $0x2c] sm:$0xf]
    %v126 = vld [vmem:[#allocation4 + $0x30] sm:$0xf]
    %v127 = vld [vmem:[#allocation4 + $0x34] sm:$0xf]
    %v128 = vld [vmem:[#allocation4 + $0x38] sm:$0xf]
    %v129 = vld [vmem:[#allocation4 + $0x3c] sm:$0xf]
    %v130 = vld [vmem:[#allocation6] sm:$0xf]
    %v131 = vld [vmem:[#allocation6 + $0x4] sm:$0xf]
    %v132 = vld [vmem:[#allocation6 + $0x8] sm:$0xf]
    %v133 = vld [vmem:[#allocation6 + $0xc] sm:$0xf]
    %v134 = vld [vmem:[#allocation6 + $0x10] sm:$0xf]
    %v135 = vld [vmem:[#allocation6 + $0x14] sm:$0xf]
    %v136 = vld [vmem:[#allocation6 + $0x18] sm:$0xf]
    %v137 = vld [vmem:[#allocation6 + $0x1c] sm:$0xf]
    %v138 = vld [vmem:[#allocation6 + $0x20] sm:$0xf]
    %v139 = vld [vmem:[#allocation6 + $0x24] sm:$0xf]
    %v140 = vld [vmem:[#allocation6 + $0x28] sm:$0xf]
    %v141 = vld [vmem:[#allocation6 + $0x2c] sm:$0xf]
    %v142 = vld [vmem:[#allocation6 + $0x30] sm:$0xf]
    %v143 = vld [vmem:[#allocation6 + $0x34] sm:$0xf]
    %v144 = vld [vmem:[#allocation6 + $0x38] sm:$0xf]
    %v145 = vld [vmem:[#allocation6 + $0x3c] sm:$0xf]
    %v146 = vld [vmem:[%s3] sm:$0x1]
    %v163 = vunpack.c.l.b16 %v114
    %v164 = vunpack.c.l.b16 %v115
    %v165 = vunpack.c.l.b16 %v116
    %v166 = vunpack.c.l.b16 %v117
    %v167 = vunpack.c.l.b16 %v118
    %v168 = vunpack.c.l.b16 %v119
    %v169 = vunpack.c.l.b16 %v120
    %v170 = vunpack.c.l.b16 %v121
    %v171 = vunpack.c.l.b16 %v122
    %v172 = vunpack.c.l.b16 %v123
    %v173 = vunpack.c.l.b16 %v124
    %v174 = vunpack.c.l.b16 %v125
    %v175 = vunpack.c.l.b16 %v126
    %v176 = vunpack.c.l.b16 %v127
    %v177 = vunpack.c.l.b16 %v128
    %v178 = vunpack.c.l.b16 %v129
    %v179 = vpack.c.b16 %v164, %v163
    %v180 = vpack.c.b16 %v166, %v165
    %v181 = vpack.c.b16 %v168, %v167
    %v182 = vpack.c.b16 %v170, %v169
    %v183 = vpack.c.b16 %v172, %v171
    %v184 = vpack.c.b16 %v174, %v173
    %v185 = vpack.c.b16 %v176, %v175
    %v186 = vpack.c.b16 %v178, %v177
    %v211 = vunpack.c.l.b16 %v130
    %v212 = vunpack.c.l.b16 %v131
    %v213 = vunpack.c.l.b16 %v132
    %v214 = vunpack.c.l.b16 %v133
    %v215 = vunpack.c.l.b16 %v134
    %v216 = vunpack.c.l.b16 %v135
    %v217 = vunpack.c.l.b16 %v136
    %v218 = vunpack.c.l.b16 %v137
    %v219 = vunpack.c.l.b16 %v138
    %v220 = vunpack.c.l.b16 %v139
    %v221 = vunpack.c.l.b16 %v140
    %v222 = vunpack.c.l.b16 %v141
    %v223 = vunpack.c.l.b16 %v142
    %v224 = vunpack.c.l.b16 %v143
    %v225 = vunpack.c.l.b16 %v144
    %v226 = vunpack.c.l.b16 %v145
    %v227 = vpack.c.b16 %v212, %v211
    %v228 = vpack.c.b16 %v214, %v213
    %v229 = vpack.c.b16 %v216, %v215
    %v230 = vpack.c.b16 %v218, %v217
    %v231 = vpack.c.b16 %v220, %v219
    %v232 = vpack.c.b16 %v222, %v221
    %v233 = vpack.c.b16 %v224, %v223
    %v234 = vpack.c.b16 %v226, %v225
    %243 = vmatprep.subr.bf16.mxu0 0
    %244 = vmatpush1.bf16.msra.mxu0 %v234
    %245 = vmatprep.subr.bf16.mxu0 0
    %246 = vmatpush1.bf16.msra.mxu0 %v233
    %247 = vmatprep.subr.bf16.mxu0 0
    %248 = vmatpush1.bf16.msra.mxu0 %v232
    %249 = vmatprep.subr.bf16.mxu0 0
    %250 = vmatpush1.bf16.msra.mxu0 %v231
    %251 = vmatprep.subr.bf16.mxu0 0
    %252 = vmatpush1.bf16.msra.mxu0 %v230
    %253 = vmatprep.subr.bf16.mxu0 0
    %254 = vmatpush1.bf16.msra.mxu0 %v229
    %255 = vmatprep.subr.bf16.mxu0 0
    %256 = vmatpush1.bf16.msra.mxu0 %v228
    %257 = vmatprep.subr.bf16.mxu0 0
    %258 = vmatpush1.bf16.msra.mxu0 %v227
    %259 = vmatprep.subr.bf16.mxu0 0
    %260 = vmatpush2.bf16.msra.mxu0 0
    %261 = vmatprep.subr.bf16.mxu0 0
    %262 = vmatpush2.bf16.msra.mxu0 0
    %263 = vmatprep.subr.bf16.mxu0 0
    %264 = vmatpush2.bf16.msra.mxu0 0
    %265 = vmatprep.subr.bf16.mxu0 0
    %266 = vmatpush2.bf16.msra.mxu0 0
    %267 = vmatprep.subr.bf16.mxu0 0
    %268 = vmatpush2.bf16.msra.mxu0 0
    %269 = vmatprep.subr.bf16.mxu0 0
    %270 = vmatpush2.bf16.msra.mxu0 0
    %271 = vmatprep.subr.bf16.mxu0 0
    %272 = vmatpush2.bf16.msra.mxu0 0
    %273 = vmatprep.subr.bf16.mxu0 0
    %274 = vmatpush2.bf16.msra.mxu0 0
    %275 = vmatprep.mubr.bf16.mxu0 0
    %276 = vmatmul.mubr.bf16.gmra.mxu0 %v179
    %v277 = vpop.f32.mrf.mxu0
    %v278 = vadd.f32 0.0, %v277
    %v279 = vpop.f32.mrf.mxu0
    %v280 = vpop.f32.mrf.mxu0
    %v281 = vadd.f32 0.0, %v280
    %v282 = vpop.f32.mrf.mxu0
    %283 = vmatprep.mubr.bf16.mxu0 0
    %284 = vmatmul.mubr.bf16.gmra.mxu0 %v180
    %v285 = vpop.f32.mrf.mxu0
    %v286 = vadd.f32 0.0, %v285
    %v287 = vpop.f32.mrf.mxu0
    %v288 = vpop.f32.mrf.mxu0
    %v289 = vadd.f32 0.0, %v288
    %v290 = vpop.f32.mrf.mxu0
    %291 = vmatprep.mubr.bf16.mxu0 0
    %292 = vmatmul.mubr.bf16.gmra.mxu0 %v181
    %v293 = vpop.f32.mrf.mxu0
    %v294 = vadd.f32 0.0, %v293
    %v295 = vpop.f32.mrf.mxu0
    %v296 = vpop.f32.mrf.mxu0
    %v297 = vadd.f32 0.0, %v296
    %v298 = vpop.f32.mrf.mxu0
    %299 = vmatprep.mubr.bf16.mxu0 0
    %300 = vmatmul.mubr.bf16.gmra.mxu0 %v182
    %v301 = vpop.f32.mrf.mxu0
    %v302 = vadd.f32 0.0, %v301
    %v303 = vpop.f32.mrf.mxu0
    %v304 = vpop.f32.mrf.mxu0
    %v305 = vadd.f32 0.0, %v304
    %v306 = vpop.f32.mrf.mxu0
    %307 = vmatprep.mubr.bf16.mxu0 0
    %308 = vmatmul.mubr.bf16.gmra.mxu0 %v183
    %v309 = vpop.f32.mrf.mxu0
    %v310 = vadd.f32 0.0, %v309
    %v311 = vpop.f32.mrf.mxu0
    %v312 = vpop.f32.mrf.mxu0
    %v313 = vadd.f32 0.0, %v312
    %v314 = vpop.f32.mrf.mxu0
    %315 = vmatprep.mubr.bf16.mxu0 0
    %316 = vmatmul.mubr.bf16.gmra.mxu0 %v184
    %v317 = vpop.f32.mrf.mxu0
    %v318 = vadd.f32 0.0, %v317
    %v319 = vpop.f32.mrf.mxu0
    %v320 = vpop.f32.mrf.mxu0
    %v321 = vadd.f32 0.0, %v320
    %v322 = vpop.f32.mrf.mxu0
    %323 = vmatprep.mubr.bf16.mxu0 0
    %324 = vmatmul.mubr.bf16.gmra.mxu0 %v185
    %v325 = vpop.f32.mrf.mxu0
    %v326 = vadd.f32 0.0, %v325
    %v327 = vpop.f32.mrf.mxu0
    %v328 = vpop.f32.mrf.mxu0
    %v329 = vadd.f32 0.0, %v328
    %v330 = vpop.f32.mrf.mxu0
    %331 = vmatprep.mubr.bf16.mxu0 0
    %332 = vmatmul.mubr.bf16.gmra.mxu0 %v186
    %v333 = vpop.f32.mrf.mxu0
    %v334 = vadd.f32 0.0, %v333
    %v335 = vpop.f32.mrf.mxu0
    %v336 = vpop.f32.mrf.mxu0
    %v337 = vadd.f32 0.0, %v336
    %v338 = vpop.f32.mrf.mxu0
    %339 = vdwg.mxu0
    %v340 = vpack.c.bf16 %v281, %v278
    %v341 = vpack.c.bf16 %v289, %v286
    %v342 = vpack.c.bf16 %v297, %v294
    %v343 = vpack.c.bf16 %v305, %v302
    %v344 = vpack.c.bf16 %v313, %v310
    %v345 = vpack.c.bf16 %v321, %v318
    %v346 = vpack.c.bf16 %v329, %v326
    %v347 = vpack.c.bf16 %v337, %v334
    %v349 = vlaneseq
    %v350 = vshrl.u32 %v349, 7
    %v351 = vsub.s32 0, %v350
    %v352 = vrot.slane %v146, %v351
    %v370 = vunpack.c.l.b16 %v98
    %v371 = vunpack.c.l.b16 %v99
    %v372 = vunpack.c.l.b16 %v100
    %v373 = vunpack.c.l.b16 %v101
    %v374 = vunpack.c.l.b16 %v102
    %v375 = vunpack.c.l.b16 %v103
    %v376 = vunpack.c.l.b16 %v104
    %v377 = vunpack.c.l.b16 %v105
    %v378 = vunpack.c.l.b16 %v106
    %v379 = vunpack.c.l.b16 %v107
    %v380 = vunpack.c.l.b16 %v108
    %v381 = vunpack.c.l.b16 %v109
    %v382 = vunpack.c.l.b16 %v110
    %v383 = vunpack.c.l.b16 %v111
    %v384 = vunpack.c.l.b16 %v112
    %v385 = vunpack.c.l.b16 %v113
    %v386 = vpack.c.b16 %v371, %v370
    %v387 = vpack.c.b16 %v373, %v372
    %v388 = vpack.c.b16 %v375, %v374
    %v389 = vpack.c.b16 %v377, %v376
    %v390 = vpack.c.b16 %v379, %v378
    %v391 = vpack.c.b16 %v381, %v380
    %v392 = vpack.c.b16 %v383, %v382
    %v393 = vpack.c.b16 %v385, %v384
    %402 = vmatprep.subr.bf16.mxu0 0
    %403 = vmatpush1.bf16.msra.mxu0 %v347
    %404 = vmatprep.subr.bf16.mxu0 0
    %405 = vmatpush1.bf16.msra.mxu0 %v346
    %406 = vmatprep.subr.bf16.mxu0 0
    %407 = vmatpush1.bf16.msra.mxu0 %v345
    %408 = vmatprep.subr.bf16.mxu0 0
    %409 = vmatpush1.bf16.msra.mxu0 %v344
    %410 = vmatprep.subr.bf16.mxu0 0
    %411 = vmatpush1.bf16.msra.mxu0 %v343
    %412 = vmatprep.subr.bf16.mxu0 0
    %413 = vmatpush1.bf16.msra.mxu0 %v342
    %414 = vmatprep.subr.bf16.mxu0 0
    %415 = vmatpush1.bf16.msra.mxu0 %v341
    %416 = vmatprep.subr.bf16.mxu0 0
    %417 = vmatpush1.bf16.msra.mxu0 %v340
    %418 = vmatprep.subr.bf16.mxu0 0
    %419 = vmatpush2.bf16.msra.mxu0 0
    %420 = vmatprep.subr.bf16.mxu0 0
    %421 = vmatpush2.bf16.msra.mxu0 0
    %422 = vmatprep.subr.bf16.mxu0 0
    %423 = vmatpush2.bf16.msra.mxu0 0
    %424 = vmatprep.subr.bf16.mxu0 0
    %425 = vmatpush2.bf16.msra.mxu0 0
    %426 = vmatprep.subr.bf16.mxu0 0
    %427 = vmatpush2.bf16.msra.mxu0 0
    %428 = vmatprep.subr.bf16.mxu0 0
    %429 = vmatpush2.bf16.msra.mxu0 0
    %430 = vmatprep.subr.bf16.mxu0 0
    %431 = vmatpush2.bf16.msra.mxu0 0
    %432 = vmatprep.subr.bf16.mxu0 0
    %433 = vmatpush2.bf16.msra.mxu0 0
    %434 = vmatprep.mubr.bf16.mxu0 0
    %435 = vmatmul.mubr.bf16.gmra.mxu0 %v386
    %v436 = vpop.f32.mrf.mxu0
    %v437 = vadd.f32 %v352, %v436
    %v438 = vpop.f32.mrf.mxu0
    %v439 = vpop.f32.mrf.mxu0
    %v440 = vadd.f32 %v352, %v439
    %v441 = vpop.f32.mrf.mxu0
    %442 = vmatprep.mubr.bf16.mxu0 0
    %443 = vmatmul.mubr.bf16.gmra.mxu0 %v387
    %v444 = vpop.f32.mrf.mxu0
    %v445 = vadd.f32 %v352, %v444
    %v446 = vpop.f32.mrf.mxu0
    %v447 = vpop.f32.mrf.mxu0
    %v448 = vadd.f32 %v352, %v447
    %v449 = vpop.f32.mrf.mxu0
    %450 = vmatprep.mubr.bf16.mxu0 0
    %451 = vmatmul.mubr.bf16.gmra.mxu0 %v388
    %v452 = vpop.f32.mrf.mxu0
    %v453 = vadd.f32 %v352, %v452
    %v454 = vpop.f32.mrf.mxu0
    %v455 = vpop.f32.mrf.mxu0
    %v456 = vadd.f32 %v352, %v455
    %v457 = vpop.f32.mrf.mxu0
    %458 = vmatprep.mubr.bf16.mxu0 0
    %459 = vmatmul.mubr.bf16.gmra.mxu0 %v389
    %v460 = vpop.f32.mrf.mxu0
    %v461 = vadd.f32 %v352, %v460
    %v462 = vpop.f32.mrf.mxu0
    %v463 = vpop.f32.mrf.mxu0
    %v464 = vadd.f32 %v352, %v463
    %v465 = vpop.f32.mrf.mxu0
    %466 = vmatprep.mubr.bf16.mxu0 0
    %467 = vmatmul.mubr.bf16.gmra.mxu0 %v390
    %v468 = vpop.f32.mrf.mxu0
    %v469 = vadd.f32 %v352, %v468
    %v470 = vpop.f32.mrf.mxu0
    %v471 = vpop.f32.mrf.mxu0
    %v472 = vadd.f32 %v352, %v471
    %v473 = vpop.f32.mrf.mxu0
    %474 = vmatprep.mubr.bf16.mxu0 0
    %475 = vmatmul.mubr.bf16.gmra.mxu0 %v391
    %v476 = vpop.f32.mrf.mxu0
    %v477 = vadd.f32 %v352, %v476
    %v478 = vpop.f32.mrf.mxu0
    %v479 = vpop.f32.mrf.mxu0
    %v480 = vadd.f32 %v352, %v479
    %v481 = vpop.f32.mrf.mxu0
    %482 = vmatprep.mubr.bf16.mxu0 0
    %483 = vmatmul.mubr.bf16.gmra.mxu0 %v392
    %v484 = vpop.f32.mrf.mxu0
    %v485 = vadd.f32 %v352, %v484
    %v486 = vpop.f32.mrf.mxu0
    %v487 = vpop.f32.mrf.mxu0
    %v488 = vadd.f32 %v352, %v487
    %v489 = vpop.f32.mrf.mxu0
    %490 = vmatprep.mubr.bf16.mxu0 0
    %491 = vmatmul.mubr.bf16.gmra.mxu0 %v393
    %v492 = vpop.f32.mrf.mxu0
    %v493 = vadd.f32 %v352, %v492
    %v494 = vpop.f32.mrf.mxu0
    %v495 = vpop.f32.mrf.mxu0
    %v496 = vadd.f32 %v352, %v495
    %v497 = vpop.f32.mrf.mxu0
    %498 = vdwg.mxu0
    %v499 = vmax.f32 %v437, 0.0
    %v500 = vmax.f32 %v440, 0.0
    %v501 = vmax.f32 %v445, 0.0
    %v502 = vmax.f32 %v448, 0.0
    %v503 = vmax.f32 %v453, 0.0
    %v504 = vmax.f32 %v456, 0.0
    %v505 = vmax.f32 %v461, 0.0
    %v506 = vmax.f32 %v464, 0.0
    %v507 = vmax.f32 %v469, 0.0
    %v508 = vmax.f32 %v472, 0.0
    %v509 = vmax.f32 %v477, 0.0
    %v510 = vmax.f32 %v480, 0.0
    %v511 = vmax.f32 %v485, 0.0
    %v512 = vmax.f32 %v488, 0.0
    %v513 = vmax.f32 %v493, 0.0
    %v514 = vmax.f32 %v496, 0.0
    %v515 = vpack.c.bf16 %v500, %v499
    %v516 = vpack.c.bf16 %v502, %v501
    %v517 = vpack.c.bf16 %v504, %v503
    %v518 = vpack.c.bf16 %v506, %v505
    %v519 = vpack.c.bf16 %v508, %v507
    %v520 = vpack.c.bf16 %v510, %v509
    %v521 = vpack.c.bf16 %v512, %v511
    %v522 = vpack.c.bf16 %v514, %v513
    %v523 = vld [vmem:[#allocation7] sm:$0xf]
    %v524 = vld [vmem:[#allocation7 + $0x4] sm:$0xf]
    %v525 = vld [vmem:[#allocation7 + $0x8] sm:$0xf]
    %v526 = vld [vmem:[#allocation7 + $0xc] sm:$0xf]
    %v527 = vld [vmem:[#allocation7 + $0x10] sm:$0xf]
    %v528 = vld [vmem:[#allocation7 + $0x14] sm:$0xf]
    %v529 = vld [vmem:[#allocation7 + $0x18] sm:$0xf]
    %v530 = vld [vmem:[#allocation7 + $0x1c] sm:$0xf]
    %v531 = vld [vmem:[#allocation7 + $0x20] sm:$0xf]
    %v532 = vld [vmem:[#allocation7 + $0x24] sm:$0xf]
    %v533 = vld [vmem:[#allocation7 + $0x28] sm:$0xf]
    %v534 = vld [vmem:[#allocation7 + $0x2c] sm:$0xf]
    %v535 = vld [vmem:[#allocation7 + $0x30] sm:$0xf]
    %v536 = vld [vmem:[#allocation7 + $0x34] sm:$0xf]
    %v537 = vld [vmem:[#allocation7 + $0x38] sm:$0xf]
    %v538 = vld [vmem:[#allocation7 + $0x3c] sm:$0xf]
    %v539 = vld [vmem:[%s5] sm:$0x1]
    %v556 = vunpack.c.l.b16 %v523
    %v557 = vunpack.c.l.b16 %v524
    %v558 = vunpack.c.l.b16 %v525
    %v559 = vunpack.c.l.b16 %v526
    %v560 = vunpack.c.l.b16 %v527
    %v561 = vunpack.c.l.b16 %v528
    %v562 = vunpack.c.l.b16 %v529
    %v563 = vunpack.c.l.b16 %v530
    %v564 = vunpack.c.l.b16 %v531
    %v565 = vunpack.c.l.b16 %v532
    %v566 = vunpack.c.l.b16 %v533
    %v567 = vunpack.c.l.b16 %v534
    %v568 = vunpack.c.l.b16 %v535
    %v569 = vunpack.c.l.b16 %v536
    %v570 = vunpack.c.l.b16 %v537
    %v571 = vunpack.c.l.b16 %v538
    %v572 = vpack.c.b16 %v557, %v556
    %v573 = vpack.c.b16 %v559, %v558
    %v574 = vpack.c.b16 %v561, %v560
    %v575 = vpack.c.b16 %v563, %v562
    %v576 = vpack.c.b16 %v565, %v564
    %v577 = vpack.c.b16 %v567, %v566
    %v578 = vpack.c.b16 %v569, %v568
    %v579 = vpack.c.b16 %v571, %v570
    %588 = vmatprep.subr.bf16.mxu0 0
    %589 = vmatpush1.bf16.msra.mxu0 %v579
    %590 = vmatprep.subr.bf16.mxu0 0
    %591 = vmatpush1.bf16.msra.mxu0 %v578
    %592 = vmatprep.subr.bf16.mxu0 0
    %593 = vmatpush1.bf16.msra.mxu0 %v577
    %594 = vmatprep.subr.bf16.mxu0 0
    %595 = vmatpush1.bf16.msra.mxu0 %v576
    %596 = vmatprep.subr.bf16.mxu0 0
    %597 = vmatpush1.bf16.msra.mxu0 %v575
    %598 = vmatprep.subr.bf16.mxu0 0
    %599 = vmatpush1.bf16.msra.mxu0 %v574
    %600 = vmatprep.subr.bf16.mxu0 0
    %601 = vmatpush1.bf16.msra.mxu0 %v573
    %602 = vmatprep.subr.bf16.mxu0 0
    %603 = vmatpush1.bf16.msra.mxu0 %v572
    %604 = vmatprep.subr.bf16.mxu0 0
    %605 = vmatpush2.bf16.msra.mxu0 0
    %606 = vmatprep.subr.bf16.mxu0 0
    %607 = vmatpush2.bf16.msra.mxu0 0
    %608 = vmatprep.subr.bf16.mxu0 0
    %609 = vmatpush2.bf16.msra.mxu0 0
    %610 = vmatprep.subr.bf16.mxu0 0
    %611 = vmatpush2.bf16.msra.mxu0 0
    %612 = vmatprep.subr.bf16.mxu0 0
    %613 = vmatpush2.bf16.msra.mxu0 0
    %614 = vmatprep.subr.bf16.mxu0 0
    %615 = vmatpush2.bf16.msra.mxu0 0
    %616 = vmatprep.subr.bf16.mxu0 0
    %617 = vmatpush2.bf16.msra.mxu0 0
    %618 = vmatprep.subr.bf16.mxu0 0
    %619 = vmatpush2.bf16.msra.mxu0 0
    %620 = vmatprep.mubr.bf16.mxu0 0
    %621 = vmatmul.mubr.bf16.gmra.mxu0 %v515
    %v622 = vpop.f32.mrf.mxu0
    %v623 = vadd.f32 0.0, %v622
    %v624 = vpop.f32.mrf.mxu0
    %v625 = vpop.f32.mrf.mxu0
    %v626 = vadd.f32 0.0, %v625
    %v627 = vpop.f32.mrf.mxu0
    %628 = vmatprep.mubr.bf16.mxu0 0
    %629 = vmatmul.mubr.bf16.gmra.mxu0 %v516
    %v630 = vpop.f32.mrf.mxu0
    %v631 = vadd.f32 0.0, %v630
    %v632 = vpop.f32.mrf.mxu0
    %v633 = vpop.f32.mrf.mxu0
    %v634 = vadd.f32 0.0, %v633
    %v635 = vpop.f32.mrf.mxu0
    %636 = vmatprep.mubr.bf16.mxu0 0
    %637 = vmatmul.mubr.bf16.gmra.mxu0 %v517
    %v638 = vpop.f32.mrf.mxu0
    %v639 = vadd.f32 0.0, %v638
    %v640 = vpop.f32.mrf.mxu0
    %v641 = vpop.f32.mrf.mxu0
    %v642 = vadd.f32 0.0, %v641
    %v643 = vpop.f32.mrf.mxu0
    %644 = vmatprep.mubr.bf16.mxu0 0
    %645 = vmatmul.mubr.bf16.gmra.mxu0 %v518
    %v646 = vpop.f32.mrf.mxu0
    %v647 = vadd.f32 0.0, %v646
    %v648 = vpop.f32.mrf.mxu0
    %v649 = vpop.f32.mrf.mxu0
    %v650 = vadd.f32 0.0, %v649
    %v651 = vpop.f32.mrf.mxu0
    %652 = vmatprep.mubr.bf16.mxu0 0
    %653 = vmatmul.mubr.bf16.gmra.mxu0 %v519
    %v654 = vpop.f32.mrf.mxu0
    %v655 = vadd.f32 0.0, %v654
    %v656 = vpop.f32.mrf.mxu0
    %v657 = vpop.f32.mrf.mxu0
    %v658 = vadd.f32 0.0, %v657
    %v659 = vpop.f32.mrf.mxu0
    %660 = vmatprep.mubr.bf16.mxu0 0
    %661 = vmatmul.mubr.bf16.gmra.mxu0 %v520
    %v662 = vpop.f32.mrf.mxu0
    %v663 = vadd.f32 0.0, %v662
    %v664 = vpop.f32.mrf.mxu0
    %v665 = vpop.f32.mrf.mxu0
    %v666 = vadd.f32 0.0, %v665
    %v667 = vpop.f32.mrf.mxu0
    %668 = vmatprep.mubr.bf16.mxu0 0
    %669 = vmatmul.mubr.bf16.gmra.mxu0 %v521
    %v670 = vpop.f32.mrf.mxu0
    %v671 = vadd.f32 0.0, %v670
    %v672 = vpop.f32.mrf.mxu0
    %v673 = vpop.f32.mrf.mxu0
    %v674 = vadd.f32 0.0, %v673
    %v675 = vpop.f32.mrf.mxu0
    %676 = vmatprep.mubr.bf16.mxu0 0
    %677 = vmatmul.mubr.bf16.gmra.mxu0 %v522
    %v678 = vpop.f32.mrf.mxu0
    %v679 = vadd.f32 0.0, %v678
    %v680 = vpop.f32.mrf.mxu0
    %v681 = vpop.f32.mrf.mxu0
    %v682 = vadd.f32 0.0, %v681
    %v683 = vpop.f32.mrf.mxu0
    %684 = vdwg.mxu0
    %v685 = vpack.c.bf16 %v626, %v623
    %v686 = vpack.c.bf16 %v634, %v631
    %v687 = vpack.c.bf16 %v642, %v639
    %v688 = vpack.c.bf16 %v650, %v647
    %v689 = vpack.c.bf16 %v658, %v655
    %v690 = vpack.c.bf16 %v666, %v663
    %v691 = vpack.c.bf16 %v674, %v671
    %v692 = vpack.c.bf16 %v682, %v679
    %v694 = vlaneseq
    %v695 = vshrl.u32 %v694, 7
    %v696 = vsub.s32 0, %v695
    %v697 = vrot.slane %v539, %v696
    %699 = vmatprep.subr.bf16.mxu0 0
    %700 = vmatpush1.bf16.msra.mxu0 %v692
    %701 = vmatprep.subr.bf16.mxu0 0
    %702 = vmatpush1.bf16.msra.mxu0 %v691
    %703 = vmatprep.subr.bf16.mxu0 0
    %704 = vmatpush1.bf16.msra.mxu0 %v690
    %705 = vmatprep.subr.bf16.mxu0 0
    %706 = vmatpush1.bf16.msra.mxu0 %v689
    %707 = vmatprep.subr.bf16.mxu0 0
    %708 = vmatpush1.bf16.msra.mxu0 %v688
    %709 = vmatprep.subr.bf16.mxu0 0
    %710 = vmatpush1.bf16.msra.mxu0 %v687
    %711 = vmatprep.subr.bf16.mxu0 0
    %712 = vmatpush1.bf16.msra.mxu0 %v686
    %713 = vmatprep.subr.bf16.mxu0 0
    %714 = vmatpush1.bf16.msra.mxu0 %v685
    %715 = vmatprep.subr.bf16.mxu0 0
    %716 = vmatpush2.bf16.msra.mxu0 0
    %717 = vmatprep.subr.bf16.mxu0 0
    %718 = vmatpush2.bf16.msra.mxu0 0
    %719 = vmatprep.subr.bf16.mxu0 0
    %720 = vmatpush2.bf16.msra.mxu0 0
    %721 = vmatprep.subr.bf16.mxu0 0
    %722 = vmatpush2.bf16.msra.mxu0 0
    %723 = vmatprep.subr.bf16.mxu0 0
    %724 = vmatpush2.bf16.msra.mxu0 0
    %725 = vmatprep.subr.bf16.mxu0 0
    %726 = vmatpush2.bf16.msra.mxu0 0
    %727 = vmatprep.subr.bf16.mxu0 0
    %728 = vmatpush2.bf16.msra.mxu0 0
    %729 = vmatprep.subr.bf16.mxu0 0
    %730 = vmatpush2.bf16.msra.mxu0 0
    %731 = vmatprep.mubr.bf16.mxu0 0
    %732 = vmatmul.mubr.bf16.gmra.mxu0 %v386
    %v733 = vpop.f32.mrf.mxu0
    %v734 = vadd.f32 %v697, %v733
    %v735 = vpop.f32.mrf.mxu0
    %v736 = vpop.f32.mrf.mxu0
    %v737 = vadd.f32 %v697, %v736
    %v738 = vpop.f32.mrf.mxu0
    %739 = vmatprep.mubr.bf16.mxu0 0
    %740 = vmatmul.mubr.bf16.gmra.mxu0 %v387
    %v741 = vpop.f32.mrf.mxu0
    %v742 = vadd.f32 %v697, %v741
    %v743 = vpop.f32.mrf.mxu0
    %v744 = vpop.f32.mrf.mxu0
    %v745 = vadd.f32 %v697, %v744
    %v746 = vpop.f32.mrf.mxu0
    %747 = vmatprep.mubr.bf16.mxu0 0
    %748 = vmatmul.mubr.bf16.gmra.mxu0 %v388
    %v749 = vpop.f32.mrf.mxu0
    %v750 = vadd.f32 %v697, %v749
    %v751 = vpop.f32.mrf.mxu0
    %v752 = vpop.f32.mrf.mxu0
    %v753 = vadd.f32 %v697, %v752
    %v754 = vpop.f32.mrf.mxu0
    %755 = vmatprep.mubr.bf16.mxu0 0
    %756 = vmatmul.mubr.bf16.gmra.mxu0 %v389
    %v757 = vpop.f32.mrf.mxu0
    %v758 = vadd.f32 %v697, %v757
    %v759 = vpop.f32.mrf.mxu0
    %v760 = vpop.f32.mrf.mxu0
    %v761 = vadd.f32 %v697, %v760
    %v762 = vpop.f32.mrf.mxu0
    %763 = vmatprep.mubr.bf16.mxu0 0
    %764 = vmatmul.mubr.bf16.gmra.mxu0 %v390
    %v765 = vpop.f32.mrf.mxu0
    %v766 = vadd.f32 %v697, %v765
    %v767 = vpop.f32.mrf.mxu0
    %v768 = vpop.f32.mrf.mxu0
    %v769 = vadd.f32 %v697, %v768
    %v770 = vpop.f32.mrf.mxu0
    %771 = vmatprep.mubr.bf16.mxu0 0
    %772 = vmatmul.mubr.bf16.gmra.mxu0 %v391
    %v773 = vpop.f32.mrf.mxu0
    %v774 = vadd.f32 %v697, %v773
    %v775 = vpop.f32.mrf.mxu0
    %v776 = vpop.f32.mrf.mxu0
    %v777 = vadd.f32 %v697, %v776
    %v778 = vpop.f32.mrf.mxu0
    %779 = vmatprep.mubr.bf16.mxu0 0
    %780 = vmatmul.mubr.bf16.gmra.mxu0 %v392
    %v781 = vpop.f32.mrf.mxu0
    %v782 = vadd.f32 %v697, %v781
    %v783 = vpop.f32.mrf.mxu0
    %v784 = vpop.f32.mrf.mxu0
    %v785 = vadd.f32 %v697, %v784
    %v786 = vpop.f32.mrf.mxu0
    %787 = vmatprep.mubr.bf16.mxu0 0
    %788 = vmatmul.mubr.bf16.gmra.mxu0 %v393
    %v789 = vpop.f32.mrf.mxu0
    %v790 = vadd.f32 %v697, %v789
    %v791 = vpop.f32.mrf.mxu0
    %v792 = vpop.f32.mrf.mxu0
    %v793 = vadd.f32 %v697, %v792
    %v794 = vpop.f32.mrf.mxu0
    %795 = vdwg.mxu0
    %v796 = vmax.f32 %v734, 0.0
    %v797 = vmax.f32 %v737, 0.0
    %v798 = vmax.f32 %v742, 0.0
    %v799 = vmax.f32 %v745, 0.0
    %v800 = vmax.f32 %v750, 0.0
    %v801 = vmax.f32 %v753, 0.0
    %v802 = vmax.f32 %v758, 0.0
    %v803 = vmax.f32 %v761, 0.0
    %v804 = vmax.f32 %v766, 0.0
    %v805 = vmax.f32 %v769, 0.0
    %v806 = vmax.f32 %v774, 0.0
    %v807 = vmax.f32 %v777, 0.0
    %v808 = vmax.f32 %v782, 0.0
    %v809 = vmax.f32 %v785, 0.0
    %v810 = vmax.f32 %v790, 0.0
    %v811 = vmax.f32 %v793, 0.0
    %v812 = vpack.c.bf16 %v797, %v796
    %v813 = vpack.c.bf16 %v799, %v798
    %v814 = vpack.c.bf16 %v801, %v800
    %v815 = vpack.c.bf16 %v803, %v802
    %v816 = vpack.c.bf16 %v805, %v804
    %v817 = vpack.c.bf16 %v807, %v806
    %v818 = vpack.c.bf16 %v809, %v808
    %v819 = vpack.c.bf16 %v811, %v810
    %v820 = vld [vmem:[#allocation9] sm:$0xf]
    %v821 = vld [vmem:[#allocation9 + $0x4] sm:$0xf]
    %v822 = vld [vmem:[#allocation9 + $0x8] sm:$0xf]
    %v823 = vld [vmem:[#allocation9 + $0xc] sm:$0xf]
    %v824 = vld [vmem:[#allocation9 + $0x10] sm:$0xf]
    %v825 = vld [vmem:[#allocation9 + $0x14] sm:$0xf]
    %v826 = vld [vmem:[#allocation9 + $0x18] sm:$0xf]
    %v827 = vld [vmem:[#allocation9 + $0x1c] sm:$0xf]
    %v828 = vld [vmem:[#allocation9 + $0x20] sm:$0xf]
    %v829 = vld [vmem:[#allocation9 + $0x24] sm:$0xf]
    %v830 = vld [vmem:[#allocation9 + $0x28] sm:$0xf]
    %v831 = vld [vmem:[#allocation9 + $0x2c] sm:$0xf]
    %v832 = vld [vmem:[#allocation9 + $0x30] sm:$0xf]
    %v833 = vld [vmem:[#allocation9 + $0x34] sm:$0xf]
    %v834 = vld [vmem:[#allocation9 + $0x38] sm:$0xf]
    %v835 = vld [vmem:[#allocation9 + $0x3c] sm:$0xf]
    %v836 = vld [vmem:[%s7] sm:$0x1]
    %v853 = vunpack.c.l.b16 %v820
    %v854 = vunpack.c.l.b16 %v821
    %v855 = vunpack.c.l.b16 %v822
    %v856 = vunpack.c.l.b16 %v823
    %v857 = vunpack.c.l.b16 %v824
    %v858 = vunpack.c.l.b16 %v825
    %v859 = vunpack.c.l.b16 %v826
    %v860 = vunpack.c.l.b16 %v827
    %v861 = vunpack.c.l.b16 %v828
    %v862 = vunpack.c.l.b16 %v829
    %v863 = vunpack.c.l.b16 %v830
    %v864 = vunpack.c.l.b16 %v831
    %v865 = vunpack.c.l.b16 %v832
    %v866 = vunpack.c.l.b16 %v833
    %v867 = vunpack.c.l.b16 %v834
    %v868 = vunpack.c.l.b16 %v835
    %v869 = vpack.c.b16 %v854, %v853
    %v870 = vpack.c.b16 %v856, %v855
    %v871 = vpack.c.b16 %v858, %v857
    %v872 = vpack.c.b16 %v860, %v859
    %v873 = vpack.c.b16 %v862, %v861
    %v874 = vpack.c.b16 %v864, %v863
    %v875 = vpack.c.b16 %v866, %v865
    %v876 = vpack.c.b16 %v868, %v867
    %885 = vmatprep.subr.bf16.mxu0 0
    %886 = vmatpush1.bf16.msra.mxu0 %v876
    %887 = vmatprep.subr.bf16.mxu0 0
    %888 = vmatpush1.bf16.msra.mxu0 %v875
    %889 = vmatprep.subr.bf16.mxu0 0
    %890 = vmatpush1.bf16.msra.mxu0 %v874
    %891 = vmatprep.subr.bf16.mxu0 0
    %892 = vmatpush1.bf16.msra.mxu0 %v873
    %893 = vmatprep.subr.bf16.mxu0 0
    %894 = vmatpush1.bf16.msra.mxu0 %v872
    %895 = vmatprep.subr.bf16.mxu0 0
    %896 = vmatpush1.bf16.msra.mxu0 %v871
    %897 = vmatprep.subr.bf16.mxu0 0
    %898 = vmatpush1.bf16.msra.mxu0 %v870
    %899 = vmatprep.subr.bf16.mxu0 0
    %900 = vmatpush1.bf16.msra.mxu0 %v869
    %901 = vmatprep.subr.bf16.mxu0 0
    %902 = vmatpush2.bf16.msra.mxu0 0
    %903 = vmatprep.subr.bf16.mxu0 0
    %904 = vmatpush2.bf16.msra.mxu0 0
    %905 = vmatprep.subr.bf16.mxu0 0
    %906 = vmatpush2.bf16.msra.mxu0 0
    %907 = vmatprep.subr.bf16.mxu0 0
    %908 = vmatpush2.bf16.msra.mxu0 0
    %909 = vmatprep.subr.bf16.mxu0 0
    %910 = vmatpush2.bf16.msra.mxu0 0
    %911 = vmatprep.subr.bf16.mxu0 0
    %912 = vmatpush2.bf16.msra.mxu0 0
    %913 = vmatprep.subr.bf16.mxu0 0
    %914 = vmatpush2.bf16.msra.mxu0 0
    %915 = vmatprep.subr.bf16.mxu0 0
    %916 = vmatpush2.bf16.msra.mxu0 0
    %917 = vmatprep.mubr.bf16.mxu0 0
    %918 = vmatmul.mubr.bf16.gmra.mxu0 %v812
    %v919 = vpop.f32.mrf.mxu0
    %v920 = vadd.f32 0.0, %v919
    %v921 = vpop.f32.mrf.mxu0
    %v922 = vpop.f32.mrf.mxu0
    %v923 = vadd.f32 0.0, %v922
    %v924 = vpop.f32.mrf.mxu0
    %925 = vmatprep.mubr.bf16.mxu0 0
    %926 = vmatmul.mubr.bf16.gmra.mxu0 %v813
    %v927 = vpop.f32.mrf.mxu0
    %v928 = vadd.f32 0.0, %v927
    %v929 = vpop.f32.mrf.mxu0
    %v930 = vpop.f32.mrf.mxu0
    %v931 = vadd.f32 0.0, %v930
    %v932 = vpop.f32.mrf.mxu0
    %933 = vmatprep.mubr.bf16.mxu0 0
    %934 = vmatmul.mubr.bf16.gmra.mxu0 %v814
    %v935 = vpop.f32.mrf.mxu0
    %v936 = vadd.f32 0.0, %v935
    %v937 = vpop.f32.mrf.mxu0
    %v938 = vpop.f32.mrf.mxu0
    %v939 = vadd.f32 0.0, %v938
    %v940 = vpop.f32.mrf.mxu0
    %941 = vmatprep.mubr.bf16.mxu0 0
    %942 = vmatmul.mubr.bf16.gmra.mxu0 %v815
    %v943 = vpop.f32.mrf.mxu0
    %v944 = vadd.f32 0.0, %v943
    %v945 = vpop.f32.mrf.mxu0
    %v946 = vpop.f32.mrf.mxu0
    %v947 = vadd.f32 0.0, %v946
    %v948 = vpop.f32.mrf.mxu0
    %949 = vmatprep.mubr.bf16.mxu0 0
    %950 = vmatmul.mubr.bf16.gmra.mxu0 %v816
    %v951 = vpop.f32.mrf.mxu0
    %v952 = vadd.f32 0.0, %v951
    %v953 = vpop.f32.mrf.mxu0
    %v954 = vpop.f32.mrf.mxu0
    %v955 = vadd.f32 0.0, %v954
    %v956 = vpop.f32.mrf.mxu0
    %957 = vmatprep.mubr.bf16.mxu0 0
    %958 = vmatmul.mubr.bf16.gmra.mxu0 %v817
    %v959 = vpop.f32.mrf.mxu0
    %v960 = vadd.f32 0.0, %v959
    %v961 = vpop.f32.mrf.mxu0
    %v962 = vpop.f32.mrf.mxu0
    %v963 = vadd.f32 0.0, %v962
    %v964 = vpop.f32.mrf.mxu0
    %965 = vmatprep.mubr.bf16.mxu0 0
    %966 = vmatmul.mubr.bf16.gmra.mxu0 %v818
    %v967 = vpop.f32.mrf.mxu0
    %v968 = vadd.f32 0.0, %v967
    %v969 = vpop.f32.mrf.mxu0
    %v970 = vpop.f32.mrf.mxu0
    %v971 = vadd.f32 0.0, %v970
    %v972 = vpop.f32.mrf.mxu0
    %973 = vmatprep.mubr.bf16.mxu0 0
    %974 = vmatmul.mubr.bf16.gmra.mxu0 %v819
    %v975 = vpop.f32.mrf.mxu0
    %v976 = vadd.f32 0.0, %v975
    %v977 = vpop.f32.mrf.mxu0
    %v978 = vpop.f32.mrf.mxu0
    %v979 = vadd.f32 0.0, %v978
    %v980 = vpop.f32.mrf.mxu0
    %981 = vdwg.mxu0
    %v982 = vpack.c.bf16 %v923, %v920
    %v983 = vpack.c.bf16 %v931, %v928
    %v984 = vpack.c.bf16 %v939, %v936
    %v985 = vpack.c.bf16 %v947, %v944
    %v986 = vpack.c.bf16 %v955, %v952
    %v987 = vpack.c.bf16 %v963, %v960
    %v988 = vpack.c.bf16 %v971, %v968
    %v989 = vpack.c.bf16 %v979, %v976
    %v991 = vlaneseq
    %v992 = vshrl.u32 %v991, 7
    %v993 = vsub.s32 0, %v992
    %v994 = vrot.slane %v836, %v993
    %996 = vmatprep.subr.bf16.mxu0 0
    %997 = vmatpush1.bf16.msra.mxu0 %v989
    %998 = vmatprep.subr.bf16.mxu0 0
    %999 = vmatpush1.bf16.msra.mxu0 %v988
    %1000 = vmatprep.subr.bf16.mxu0 0
    %1001 = vmatpush1.bf16.msra.mxu0 %v987
    %1002 = vmatprep.subr.bf16.mxu0 0
    %1003 = vmatpush1.bf16.msra.mxu0 %v986
    %1004 = vmatprep.subr.bf16.mxu0 0
    %1005 = vmatpush1.bf16.msra.mxu0 %v985
    %1006 = vmatprep.subr.bf16.mxu0 0
    %1007 = vmatpush1.bf16.msra.mxu0 %v984
    %1008 = vmatprep.subr.bf16.mxu0 0
    %1009 = vmatpush1.bf16.msra.mxu0 %v983
    %1010 = vmatprep.subr.bf16.mxu0 0
    %1011 = vmatpush1.bf16.msra.mxu0 %v982
    %1012 = vmatprep.subr.bf16.mxu0 0
    %1013 = vmatpush2.bf16.msra.mxu0 0
    %1014 = vmatprep.subr.bf16.mxu0 0
    %1015 = vmatpush2.bf16.msra.mxu0 0
    %1016 = vmatprep.subr.bf16.mxu0 0
    %1017 = vmatpush2.bf16.msra.mxu0 0
    %1018 = vmatprep.subr.bf16.mxu0 0
    %1019 = vmatpush2.bf16.msra.mxu0 0
    %1020 = vmatprep.subr.bf16.mxu0 0
    %1021 = vmatpush2.bf16.msra.mxu0 0
    %1022 = vmatprep.subr.bf16.mxu0 0
    %1023 = vmatpush2.bf16.msra.mxu0 0
    %1024 = vmatprep.subr.bf16.mxu0 0
    %1025 = vmatpush2.bf16.msra.mxu0 0
    %1026 = vmatprep.subr.bf16.mxu0 0
    %1027 = vmatpush2.bf16.msra.mxu0 0
    %1028 = vmatprep.mubr.bf16.mxu0 0
    %1029 = vmatmul.mubr.bf16.gmra.mxu0 %v386
    %v1030 = vpop.f32.mrf.mxu0
    %v1031 = vadd.f32 %v994, %v1030
    %v1032 = vpop.f32.mrf.mxu0
    %v1033 = vpop.f32.mrf.mxu0
    %v1034 = vadd.f32 %v994, %v1033
    %v1035 = vpop.f32.mrf.mxu0
    %1036 = vmatprep.mubr.bf16.mxu0 0
    %1037 = vmatmul.mubr.bf16.gmra.mxu0 %v387
    %v1038 = vpop.f32.mrf.mxu0
    %v1039 = vadd.f32 %v994, %v1038
    %v1040 = vpop.f32.mrf.mxu0
    %v1041 = vpop.f32.mrf.mxu0
    %v1042 = vadd.f32 %v994, %v1041
    %v1043 = vpop.f32.mrf.mxu0
    %1044 = vmatprep.mubr.bf16.mxu0 0
    %1045 = vmatmul.mubr.bf16.gmra.mxu0 %v388
    %v1046 = vpop.f32.mrf.mxu0
    %v1047 = vadd.f32 %v994, %v1046
    %v1048 = vpop.f32.mrf.mxu0
    %v1049 = vpop.f32.mrf.mxu0
    %v1050 = vadd.f32 %v994, %v1049
    %v1051 = vpop.f32.mrf.mxu0
    %1052 = vmatprep.mubr.bf16.mxu0 0
    %1053 = vmatmul.mubr.bf16.gmra.mxu0 %v389
    %v1054 = vpop.f32.mrf.mxu0
    %v1055 = vadd.f32 %v994, %v1054
    %v1056 = vpop.f32.mrf.mxu0
    %v1057 = vpop.f32.mrf.mxu0
    %v1058 = vadd.f32 %v994, %v1057
    %v1059 = vpop.f32.mrf.mxu0
    %1060 = vmatprep.mubr.bf16.mxu0 0
    %1061 = vmatmul.mubr.bf16.gmra.mxu0 %v390
    %v1062 = vpop.f32.mrf.mxu0
    %v1063 = vadd.f32 %v994, %v1062
    %v1064 = vpop.f32.mrf.mxu0
    %v1065 = vpop.f32.mrf.mxu0
    %v1066 = vadd.f32 %v994, %v1065
    %v1067 = vpop.f32.mrf.mxu0
    %1068 = vmatprep.mubr.bf16.mxu0 0
    %1069 = vmatmul.mubr.bf16.gmra.mxu0 %v391
    %v1070 = vpop.f32.mrf.mxu0
    %v1071 = vadd.f32 %v994, %v1070
    %v1072 = vpop.f32.mrf.mxu0
    %v1073 = vpop.f32.mrf.mxu0
    %v1074 = vadd.f32 %v994, %v1073
    %v1075 = vpop.f32.mrf.mxu0
    %1076 = vmatprep.mubr.bf16.mxu0 0
    %1077 = vmatmul.mubr.bf16.gmra.mxu0 %v392
    %v1078 = vpop.f32.mrf.mxu0
    %v1079 = vadd.f32 %v994, %v1078
    %v1080 = vpop.f32.mrf.mxu0
    %v1081 = vpop.f32.mrf.mxu0
    %v1082 = vadd.f32 %v994, %v1081
    %v1083 = vpop.f32.mrf.mxu0
    %1084 = vmatprep.mubr.bf16.mxu0 0
    %1085 = vmatmul.mubr.bf16.gmra.mxu0 %v393
    %v1086 = vpop.f32.mrf.mxu0
    %v1087 = vadd.f32 %v994, %v1086
    %v1088 = vpop.f32.mrf.mxu0
    %v1089 = vpop.f32.mrf.mxu0
    %v1090 = vadd.f32 %v994, %v1089
    %v1091 = vpop.f32.mrf.mxu0
    %1092 = vdwg.mxu0
    %v1093 = vlaneseq
    %v1094 = vand.u32 %v1093, 127
    %vm1095 = vcmp.lt.s32.totalorder %v1094, 8
    %v1096 = vsel %vm1095, %v1031, -inf
    %v1097 = vsel %vm1095, %v1034, -inf
    %v1098 = vsel %vm1095, %v1039, -inf
    %v1099 = vsel %vm1095, %v1042, -inf
    %v1100 = vsel %vm1095, %v1047, -inf
    %v1101 = vsel %vm1095, %v1050, -inf
    %v1102 = vsel %vm1095, %v1055, -inf
    %v1103 = vsel %vm1095, %v1058, -inf
    %v1104 = vsel %vm1095, %v1063, -inf
    %v1105 = vsel %vm1095, %v1066, -inf
    %v1106 = vsel %vm1095, %v1071, -inf
    %v1107 = vsel %vm1095, %v1074, -inf
    %v1108 = vsel %vm1095, %v1079, -inf
    %v1109 = vsel %vm1095, %v1082, -inf
    %v1110 = vsel %vm1095, %v1087, -inf
    %v1111 = vsel %vm1095, %v1090, -inf
    %1112 = vmax.xlane.f32.xlu0 %v1096
    %v1113 = vpop.xlane.xlu0 %1112
    %1114 = vmax.xlane.f32.xlu0 %v1097
    %v1115 = vpop.xlane.xlu0 %1114
    %1116 = vmax.xlane.f32.xlu0 %v1098
    %v1117 = vpop.xlane.xlu0 %1116
    %1118 = vmax.xlane.f32.xlu0 %v1099
    %v1119 = vpop.xlane.xlu0 %1118
    %1120 = vmax.xlane.f32.xlu0 %v1100
    %v1121 = vpop.xlane.xlu0 %1120
    %1122 = vmax.xlane.f32.xlu0 %v1101
    %v1123 = vpop.xlane.xlu0 %1122
    %1124 = vmax.xlane.f32.xlu0 %v1102
    %v1125 = vpop.xlane.xlu0 %1124
    %1126 = vmax.xlane.f32.xlu0 %v1103
    %v1127 = vpop.xlane.xlu0 %1126
    %1128 = vmax.xlane.f32.xlu0 %v1104
    %v1129 = vpop.xlane.xlu0 %1128
    %1130 = vmax.xlane.f32.xlu0 %v1105
    %v1131 = vpop.xlane.xlu0 %1130
    %1132 = vmax.xlane.f32.xlu0 %v1106
    %v1133 = vpop.xlane.xlu0 %1132
    %1134 = vmax.xlane.f32.xlu0 %v1107
    %v1135 = vpop.xlane.xlu0 %1134
    %1136 = vmax.xlane.f32.xlu0 %v1108
    %v1137 = vpop.xlane.xlu0 %1136
    %1138 = vmax.xlane.f32.xlu0 %v1109
    %v1139 = vpop.xlane.xlu0 %1138
    %1140 = vmax.xlane.f32.xlu0 %v1110
    %v1141 = vpop.xlane.xlu0 %1140
    %1142 = vmax.xlane.f32.xlu0 %v1111
    %v1143 = vpop.xlane.xlu0 %1142
    %v1144 = vsub.f32 %v1096, %v1113
    %v1145 = vsub.f32 %v1097, %v1115
    %v1146 = vsub.f32 %v1098, %v1117
    %v1147 = vsub.f32 %v1099, %v1119
    %v1148 = vsub.f32 %v1100, %v1121
    %v1149 = vsub.f32 %v1101, %v1123
    %v1150 = vsub.f32 %v1102, %v1125
    %v1151 = vsub.f32 %v1103, %v1127
    %v1152 = vsub.f32 %v1104, %v1129
    %v1153 = vsub.f32 %v1105, %v1131
    %v1154 = vsub.f32 %v1106, %v1133
    %v1155 = vsub.f32 %v1107, %v1135
    %v1156 = vsub.f32 %v1108, %v1137
    %v1157 = vsub.f32 %v1109, %v1139
    %v1158 = vsub.f32 %v1110, %v1141
    %v1159 = vsub.f32 %v1111, %v1143
    %v1160 = vmul.f32 %v1144, 1.442695
    %v1161 = vpow.pop %v1160
    %v1162 = vmul.f32 %v1145, 1.442695
    %v1163 = vpow.pop %v1162
    %v1164 = vmul.f32 %v1146, 1.442695
    %v1165 = vpow.pop %v1164
    %v1166 = vmul.f32 %v1147, 1.442695
    %v1167 = vpow.pop %v1166
    %v1168 = vmul.f32 %v1148, 1.442695
    %v1169 = vpow.pop %v1168
    %v1170 = vmul.f32 %v1149, 1.442695
    %v1171 = vpow.pop %v1170
    %v1172 = vmul.f32 %v1150, 1.442695
    %v1173 = vpow.pop %v1172
    %v1174 = vmul.f32 %v1151, 1.442695
    %v1175 = vpow.pop %v1174
    %v1176 = vmul.f32 %v1152, 1.442695
    %v1177 = vpow.pop %v1176
    %v1178 = vmul.f32 %v1153, 1.442695
    %v1179 = vpow.pop %v1178
    %v1180 = vmul.f32 %v1154, 1.442695
    %v1181 = vpow.pop %v1180
    %v1182 = vmul.f32 %v1155, 1.442695
    %v1183 = vpow.pop %v1182
    %v1184 = vmul.f32 %v1156, 1.442695
    %v1185 = vpow.pop %v1184
    %v1186 = vmul.f32 %v1157, 1.442695
    %v1187 = vpow.pop %v1186
    %v1188 = vmul.f32 %v1158, 1.442695
    %v1189 = vpow.pop %v1188
    %v1190 = vmul.f32 %v1159, 1.442695
    %v1191 = vpow.pop %v1190
    %1192 = vadd.xlane.f32.xlu0 %v1161
    %v1193 = vpop.xlane.xlu0 %1192
    %1194 = vadd.xlane.f32.xlu0 %v1163
    %v1195 = vpop.xlane.xlu0 %1194
    %1196 = vadd.xlane.f32.xlu0 %v1165
    %v1197 = vpop.xlane.xlu0 %1196
    %1198 = vadd.xlane.f32.xlu0 %v1167
    %v1199 = vpop.xlane.xlu0 %1198
    %1200 = vadd.xlane.f32.xlu0 %v1169
    %v1201 = vpop.xlane.xlu0 %1200
    %1202 = vadd.xlane.f32.xlu0 %v1171
    %v1203 = vpop.xlane.xlu0 %1202
    %1204 = vadd.xlane.f32.xlu0 %v1173
    %v1205 = vpop.xlane.xlu0 %1204
    %1206 = vadd.xlane.f32.xlu0 %v1175
    %v1207 = vpop.xlane.xlu0 %1206
    %1208 = vadd.xlane.f32.xlu0 %v1177
    %v1209 = vpop.xlane.xlu0 %1208
    %1210 = vadd.xlane.f32.xlu0 %v1179
    %v1211 = vpop.xlane.xlu0 %1210
    %1212 = vadd.xlane.f32.xlu0 %v1181
    %v1213 = vpop.xlane.xlu0 %1212
    %1214 = vadd.xlane.f32.xlu0 %v1183
    %v1215 = vpop.xlane.xlu0 %1214
    %1216 = vadd.xlane.f32.xlu0 %v1185
    %v1217 = vpop.xlane.xlu0 %1216
    %1218 = vadd.xlane.f32.xlu0 %v1187
    %v1219 = vpop.xlane.xlu0 %1218
    %1220 = vadd.xlane.f32.xlu0 %v1189
    %v1221 = vpop.xlane.xlu0 %1220
    %1222 = vadd.xlane.f32.xlu0 %v1191
    %v1223 = vpop.xlane.xlu0 %1222
    %v1224 = vlog2.pop %v1193
    %v1225 = vmul.f32 %v1224, 0.6931472
    %v1226 = vlog2.pop %v1195
    %v1227 = vmul.f32 %v1226, 0.6931472
    %v1228 = vlog2.pop %v1197
    %v1229 = vmul.f32 %v1228, 0.6931472
    %v1230 = vlog2.pop %v1199
    %v1231 = vmul.f32 %v1230, 0.6931472
    %v1232 = vlog2.pop %v1201
    %v1233 = vmul.f32 %v1232, 0.6931472
    %v1234 = vlog2.pop %v1203
    %v1235 = vmul.f32 %v1234, 0.6931472
    %v1236 = vlog2.pop %v1205
    %v1237 = vmul.f32 %v1236, 0.6931472
    %v1238 = vlog2.pop %v1207
    %v1239 = vmul.f32 %v1238, 0.6931472
    %v1240 = vlog2.pop %v1209
    %v1241 = vmul.f32 %v1240, 0.6931472
    %v1242 = vlog2.pop %v1211
    %v1243 = vmul.f32 %v1242, 0.6931472
    %v1244 = vlog2.pop %v1213
    %v1245 = vmul.f32 %v1244, 0.6931472
    %v1246 = vlog2.pop %v1215
    %v1247 = vmul.f32 %v1246, 0.6931472
    %v1248 = vlog2.pop %v1217
    %v1249 = vmul.f32 %v1248, 0.6931472
    %v1250 = vlog2.pop %v1219
    %v1251 = vmul.f32 %v1250, 0.6931472
    %v1252 = vlog2.pop %v1221
    %v1253 = vmul.f32 %v1252, 0.6931472
    %v1254 = vlog2.pop %v1223
    %v1255 = vmul.f32 %v1254, 0.6931472
    %v1256 = vsub.f32 %v1144, %v1225
    %v1257 = vsub.f32 %v1145, %v1227
    %v1258 = vsub.f32 %v1146, %v1229
    %v1259 = vsub.f32 %v1147, %v1231
    %v1260 = vsub.f32 %v1148, %v1233
    %v1261 = vsub.f32 %v1149, %v1235
    %v1262 = vsub.f32 %v1150, %v1237
    %v1263 = vsub.f32 %v1151, %v1239
    %v1264 = vsub.f32 %v1152, %v1241
    %v1265 = vsub.f32 %v1153, %v1243
    %v1266 = vsub.f32 %v1154, %v1245
    %v1267 = vsub.f32 %v1155, %v1247
    %v1268 = vsub.f32 %v1156, %v1249
    %v1269 = vsub.f32 %v1157, %v1251
    %v1270 = vsub.f32 %v1158, %v1253
    %v1271 = vsub.f32 %v1159, %v1255
    %v1272 = vsel %vm1095, %v1256, 0.0
    %v1273 = vsel %vm1095, %v1257, 0.0
    %v1274 = vsel %vm1095, %v1258, 0.0
    %v1275 = vsel %vm1095, %v1259, 0.0
    %v1276 = vsel %vm1095, %v1260, 0.0
    %v1277 = vsel %vm1095, %v1261, 0.0
    %v1278 = vsel %vm1095, %v1262, 0.0
    %v1279 = vsel %vm1095, %v1263, 0.0
    %v1280 = vsel %vm1095, %v1264, 0.0
    %v1281 = vsel %vm1095, %v1265, 0.0
    %v1282 = vsel %vm1095, %v1266, 0.0
    %v1283 = vsel %vm1095, %v1267, 0.0
    %v1284 = vsel %vm1095, %v1268, 0.0
    %v1285 = vsel %vm1095, %v1269, 0.0
    %v1286 = vsel %vm1095, %v1270, 0.0
    %v1287 = vsel %vm1095, %v1271, 0.0
    %v1288 = vpack.c.bf16 %v1273, %v1272
    %v1289 = vpack.c.bf16 %v1275, %v1274
    %v1290 = vpack.c.bf16 %v1277, %v1276
    %v1291 = vpack.c.bf16 %v1279, %v1278
    %v1292 = vpack.c.bf16 %v1281, %v1280
    %v1293 = vpack.c.bf16 %v1283, %v1282
    %v1294 = vpack.c.bf16 %v1285, %v1284
    %v1295 = vpack.c.bf16 %v1287, %v1286
    %v1304 = vunpack.c.l.b16 %v1288
    %v1305 = vunpack.c.h.b16 %v1288
    %v1306 = vunpack.c.l.b16 %v1289
    %v1307 = vunpack.c.h.b16 %v1289
    %v1308 = vunpack.c.l.b16 %v1290
    %v1309 = vunpack.c.h.b16 %v1290
    %v1310 = vunpack.c.l.b16 %v1291
    %v1311 = vunpack.c.h.b16 %v1291
    %v1312 = vunpack.c.l.b16 %v1292
    %v1313 = vunpack.c.h.b16 %v1292
    %v1314 = vunpack.c.l.b16 %v1293
    %v1315 = vunpack.c.h.b16 %v1293
    %v1316 = vunpack.c.l.b16 %v1294
    %v1317 = vunpack.c.h.b16 %v1294
    %v1318 = vunpack.c.l.b16 %v1295
    %v1319 = vunpack.c.h.b16 %v1295
    %v1320 = vpack.c.b16 %v1304, %v1304
    %v1321 = vpack.c.b16 %v1305, %v1305
    %v1322 = vpack.c.b16 %v1306, %v1306
    %v1323 = vpack.c.b16 %v1307, %v1307
    %v1324 = vpack.c.b16 %v1308, %v1308
    %v1325 = vpack.c.b16 %v1309, %v1309
    %v1326 = vpack.c.b16 %v1310, %v1310
    %v1327 = vpack.c.b16 %v1311, %v1311
    %v1328 = vpack.c.b16 %v1312, %v1312
    %v1329 = vpack.c.b16 %v1313, %v1313
    %v1330 = vpack.c.b16 %v1314, %v1314
    %v1331 = vpack.c.b16 %v1315, %v1315
    %v1332 = vpack.c.b16 %v1316, %v1316
    %v1333 = vpack.c.b16 %v1317, %v1317
    %v1334 = vpack.c.b16 %v1318, %v1318
    %v1335 = vpack.c.b16 %v1319, %v1319
    %1352 = vst [vmem:[%s8] sm:$0xf] %v1320
    %1353 = vst [vmem:[%s8 + $0x4] sm:$0xf] %v1321
    %1354 = vst [vmem:[%s8 + $0x8] sm:$0xf] %v1322
    %1355 = vst [vmem:[%s8 + $0xc] sm:$0xf] %v1323
    %1356 = vst [vmem:[%s8 + $0x10] sm:$0xf] %v1324
    %1357 = vst [vmem:[%s8 + $0x14] sm:$0xf] %v1325
    %1358 = vst [vmem:[%s8 + $0x18] sm:$0xf] %v1326
    %1359 = vst [vmem:[%s8 + $0x1c] sm:$0xf] %v1327
    %1360 = vst [vmem:[%s8 + $0x20] sm:$0xf] %v1328
    %1361 = vst [vmem:[%s8 + $0x24] sm:$0xf] %v1329
    %1362 = vst [vmem:[%s8 + $0x28] sm:$0xf] %v1330
    %1363 = vst [vmem:[%s8 + $0x2c] sm:$0xf] %v1331
    %1364 = vst [vmem:[%s8 + $0x30] sm:$0xf] %v1332
    %1365 = vst [vmem:[%s8 + $0x34] sm:$0xf] %v1333
    %1366 = vst [vmem:[%s8 + $0x38] sm:$0xf] %v1334
    %1367 = vst [vmem:[%s8 + $0x3c] sm:$0xf] %v1335
    // Predicated region
    $region54: #{forward.1} parent=1 // pred_check
      _
    $region55: #{forward.1} parent=1 // pred_check_branch
      %1369 = sbr.rel (0) target = $region57
    $region56: #{forward.1} parent=1 // pred_region
      _
    $region57: #{forward.1} parent=1 // pred_fallthru
      _
    // Predicated region
    $region58: #{forward.1} parent=1 // pred_check
      _
    $region59: #{forward.1} parent=1 // pred_check_branch
      %1371 = sbr.rel (0) target = $region61
    $region60: #{forward.1} parent=1 // pred_region
      _
    $region61: #{forward.1} parent=1 // pred_fallthru
      _
    %1372 = vsyncpa [#allocation3], 1
    %1373 = vsyncpa [#allocation5], 1
    %1374 = vsyncpa [#allocation8], 1

</llo_original>
